<compile_context>
chip_gen: v5e
topology: v5e:2x2
jax: 0.10.0
libtpu: 0.0.40
codegen_flags: <defaults>
</compile_context>

<pallas_src>
import jax
import jax.numpy as jnp
from jax.experimental import pallas as pl
from jax.experimental.pallas import tpu as pltpu


def _round_up(x, m):
    return ((x + m - 1) // m) * m


def _sigmoid(z):
    # EUP-friendly sigmoid: exp and approximate reciprocal both use the EUP
    # slot instead of a multi-op VPU divide.
    return pl.reciprocal(1.0 + jnp.exp(-z), approx=True)


def encoder_kernel(x_ref, w1_ref, b1_ref, w2_ref, b2_ref, o_ref):
    # Cast activations to bf16 in-kernel (no extra wrapper HBM pass over x);
    # MXU accumulates in f32, bias + sigmoid run in f32.
    x = x_ref[...].astype(jnp.bfloat16)
    h = jnp.dot(x, w1_ref[...], preferred_element_type=jnp.float32)
    h = _sigmoid(h + b1_ref[...])                      # b1 is (1, hidden)
    y = jnp.dot(h.astype(jnp.bfloat16), w2_ref[...],
                preferred_element_type=jnp.float32)
    y = _sigmoid(y + b2_ref[...])                      # b2 is (1, output_dim)
    o_ref[...] = y.astype(o_ref.dtype)                 # (tb, output_dim) store


def prepare_params(w1, b1, w2, b2):
    """One-time parameter prep (hoisted out of the per-call path)."""
    return (w1.astype(jnp.bfloat16),
            b1.reshape(1, -1).astype(jnp.float32),
            w2.astype(jnp.bfloat16),
            b2.reshape(1, -1).astype(jnp.float32))


def encoder_forward(x, params, *, tile_b=4096):
    """x: (B, input_dim) f32; params: output of prepare_params."""
    w1_bf, b1_2d, w2_bf, b2_2d = params
    B, input_dim = x.shape
    hidden_dim = w1_bf.shape[1]
    output_dim = w2_bf.shape[1]
    out_dtype = x.dtype

    # Batch tile: multiple of 8, capped at tile_b; for large batches keep at
    # least 2 grid steps so the parallel axis can shard across v7x's 2 TCs.
    tb = min(tile_b, _round_up(B, 8))
    if B >= 1024:
        tb = min(tb, _round_up(-(-B // 2), 8))
    tb = max(8, _round_up(tb, 8))
    grid = (pl.cdiv(B, tb),)

    cost = pl.CostEstimate(
        flops=2 * B * (input_dim * hidden_dim + hidden_dim * output_dim),
        transcendentals=B * (hidden_dim + output_dim),
        bytes_accessed=(B * input_dim * 4
                        + input_dim * hidden_dim * 2
                        + hidden_dim * output_dim * 2
                        + (hidden_dim + output_dim) * 4
                        + B * output_dim * jnp.dtype(out_dtype).itemsize),
    )

    out = pl.pallas_call(
        encoder_kernel,
        out_shape=jax.ShapeDtypeStruct((B, output_dim), out_dtype),
        grid_spec=pl.GridSpec(
            grid=grid,
            in_specs=[
                # x: tiled over batch (ragged last tile handled by Pallas).
                pl.BlockSpec((tb, input_dim), lambda i: (i, 0)),
                # weights / biases: same block every step -> resident in VMEM.
                pl.BlockSpec((input_dim, hidden_dim), lambda i: (0, 0)),
                pl.BlockSpec((1, hidden_dim), lambda i: (0, 0)),
                pl.BlockSpec((hidden_dim, output_dim), lambda i: (0, 0)),
                pl.BlockSpec((1, output_dim), lambda i: (0, 0)),
            ],
            out_specs=pl.BlockSpec((tb, output_dim), lambda i: (i, 0)),
        ),
        compiler_params=pltpu.CompilerParams(
            dimension_semantics=("parallel",),   # batch tiles are independent
            vmem_limit_bytes=32 * 1024 * 1024,
        ),
        cost_estimate=cost,
    )(x, w1_bf, b1_2d, w2_bf, b2_2d)
    return out


def reference_forward(x, w1, b1, w2, b2):
    h = jax.nn.sigmoid(x @ w1 + b1)
    return jax.nn.sigmoid(h @ w2 + b2)


if __name__ == "__main__":
    # Small shapes consistent with Encoder(input_dim, hidden_dim, output_dim)
    B, input_dim, hidden_dim, output_dim = 8, 32, 64, 16

    key = jax.random.PRNGKey(0)
    k_x, k_w1, k_b1, k_w2, k_b2 = jax.random.split(key, 5)

    x = jax.random.normal(k_x, (B, input_dim), dtype=jnp.float32)
    # Deterministic init mimicking nn.Linear's uniform(-1/sqrt(fan_in), 1/sqrt(fan_in))
    lim1 = 1.0 / jnp.sqrt(jnp.float32(input_dim))
    lim2 = 1.0 / jnp.sqrt(jnp.float32(hidden_dim))
    w1 = jax.random.uniform(k_w1, (input_dim, hidden_dim), jnp.float32, -lim1, lim1)
    b1 = jax.random.uniform(k_b1, (hidden_dim,), jnp.float32, -lim1, lim1)
    w2 = jax.random.uniform(k_w2, (hidden_dim, output_dim), jnp.float32, -lim2, lim2)
    b2 = jax.random.uniform(k_b2, (output_dim,), jnp.float32, -lim2, lim2)

    params = prepare_params(w1, b1, w2, b2)   # one-time weight prep

    y = encoder_forward(x, params)
    jax.block_until_ready(y)

    y_ref = reference_forward(x, w1, b1, w2, b2)
    assert y.shape == (B, output_dim)
    # bf16 MXU operands + approx reciprocal -> loosened tolerance vs f32 reference.
    assert jnp.allclose(y, y_ref, atol=2e-2, rtol=2e-2)

    print("KERNEL_OK")
</pallas_src>

<mosaic_0001>
module attributes {stable_mosaic.version = 11 : i64} {
  func.func @encoder_kernel(%arg0: i32, %arg1: memref<8x32xf32, #tpu.memory_space<vmem>>, %arg2: memref<32x64xbf16, #tpu.memory_space<vmem>>, %arg3: memref<1x64xf32, #tpu.memory_space<vmem>>, %arg4: memref<64x16xbf16, #tpu.memory_space<vmem>>, %arg5: memref<1x16xf32, #tpu.memory_space<vmem>>, %arg6: memref<8x16xf32, #tpu.memory_space<vmem>>) attributes {dimension_semantics = [#tpu.dimension_semantics<parallel>], iteration_bounds = array<i64: 1>, scalar_prefetch = 0 : i64, scratch_operands = 0 : i64, tpu.core_type = #tpu.core_type<tc>, window_params = [{transform_indices = @transform_0, window_bounds = array<i64: 8, 32>}, {pipeline_mode = #tpu.pipeline_mode<synchronous>, transform_indices = @transform_1, window_bounds = array<i64: 32, 64>}, {pipeline_mode = #tpu.pipeline_mode<synchronous>, transform_indices = @transform_2, window_bounds = array<i64: 1, 64>}, {pipeline_mode = #tpu.pipeline_mode<synchronous>, transform_indices = @transform_3, window_bounds = array<i64: 64, 16>}, {pipeline_mode = #tpu.pipeline_mode<synchronous>, transform_indices = @transform_4, window_bounds = array<i64: 1, 16>}, {transform_indices = @transform_5, window_bounds = array<i64: 8, 16>}]} {
    %c0 = arith.constant 0 : index
    %c0_0 = arith.constant 0 : index
    %0 = vector.load %arg1[%c0, %c0_0] : memref<8x32xf32, #tpu.memory_space<vmem>>, vector<8x32xf32>
    %1 = arith.truncf %0 : vector<8x32xf32> to vector<8x32xbf16>
    %c0_1 = arith.constant 0 : index
    %c0_2 = arith.constant 0 : index
    %2 = vector.load %arg2[%c0_1, %c0_2] : memref<32x64xbf16, #tpu.memory_space<vmem>>, vector<32x64xbf16>
    %cst = arith.constant dense<0.000000e+00> : vector<8x64xf32>
    %3 = tpu.matmul %1, %2, %cst {dimension_numbers = #tpu.dot_dimension_numbers<[1], [0], [0], [1], [0, 0, 1, 1], [], []>} : vector<8x32xbf16>, vector<32x64xbf16>, vector<8x64xf32> -> vector<8x64xf32>
    %c0_3 = arith.constant 0 : index
    %c0_4 = arith.constant 0 : index
    %4 = vector.load %arg3[%c0_3, %c0_4] : memref<1x64xf32, #tpu.memory_space<vmem>>, vector<1x64xf32>
    %5 = vector.broadcast %4 : vector<1x64xf32> to vector<8x64xf32>
    %6 = arith.addf %3, %5 : vector<8x64xf32>
    %cst_5 = arith.constant 0.000000e+00 : f32
    %7 = vector.broadcast %cst_5 : f32 to vector<8x64xf32>
    %8 = arith.subf %7, %6 : vector<8x64xf32>
    %9 = math.exp %8 : vector<8x64xf32>
    %cst_6 = arith.constant 1.000000e+00 : f32
    %10 = vector.broadcast %cst_6 : f32 to vector<8x64xf32>
    %11 = arith.addf %10, %9 : vector<8x64xf32>
    %12 = tpu.reciprocal %11 {approx = true} : vector<8x64xf32> -> vector<8x64xf32>
    %13 = arith.truncf %12 : vector<8x64xf32> to vector<8x64xbf16>
    %c0_7 = arith.constant 0 : index
    %c0_8 = arith.constant 0 : index
    %14 = vector.load %arg4[%c0_7, %c0_8] : memref<64x16xbf16, #tpu.memory_space<vmem>>, vector<64x16xbf16>
    %cst_9 = arith.constant dense<0.000000e+00> : vector<8x16xf32>
    %15 = tpu.matmul %13, %14, %cst_9 {dimension_numbers = #tpu.dot_dimension_numbers<[1], [0], [0], [1], [0, 0, 1, 1], [], []>} : vector<8x64xbf16>, vector<64x16xbf16>, vector<8x16xf32> -> vector<8x16xf32>
    %c0_10 = arith.constant 0 : index
    %c0_11 = arith.constant 0 : index
    %16 = vector.load %arg5[%c0_10, %c0_11] : memref<1x16xf32, #tpu.memory_space<vmem>>, vector<1x16xf32>
    %17 = vector.broadcast %16 : vector<1x16xf32> to vector<8x16xf32>
    %18 = arith.addf %15, %17 : vector<8x16xf32>
    %cst_12 = arith.constant 0.000000e+00 : f32
    %19 = vector.broadcast %cst_12 : f32 to vector<8x16xf32>
    %20 = arith.subf %19, %18 : vector<8x16xf32>
    %21 = math.exp %20 : vector<8x16xf32>
    %cst_13 = arith.constant 1.000000e+00 : f32
    %22 = vector.broadcast %cst_13 : f32 to vector<8x16xf32>
    %23 = arith.addf %22, %21 : vector<8x16xf32>
    %24 = tpu.reciprocal %23 {approx = true} : vector<8x16xf32> -> vector<8x16xf32>
    %c0_14 = arith.constant 0 : index
    %c0_15 = arith.constant 0 : index
    %25 = vector.load %arg6[%c0_14, %c0_15] : memref<8x16xf32, #tpu.memory_space<vmem>>, vector<8x16xf32>
    tpu.vector_store %arg6[%c0_14, %c0_15], %24 {strides = array<i32>} : memref<8x16xf32, #tpu.memory_space<vmem>>, vector<8x16xf32>,
    return
  }
  func.func @transform_0(%arg0: i32) -> (i32, i32) {
    %c0_i32 = arith.constant 0 : i32
    %c0_i32_0 = arith.constant 0 : i32
    return %arg0, %c0_i32 : i32, i32
  }
  func.func @transform_1(%arg0: i32) -> (i32, i32) {
    %c0_i32 = arith.constant 0 : i32
    %c0_i32_0 = arith.constant 0 : i32
    %c0_i32_1 = arith.constant 0 : i32
    return %c0_i32, %c0_i32_0 : i32, i32
  }
  func.func @transform_2(%arg0: i32) -> (i32, i32) {
    %c0_i32 = arith.constant 0 : i32
    %c0_i32_0 = arith.constant 0 : i32
    %c0_i32_1 = arith.constant 0 : i32
    return %c0_i32, %c0_i32_0 : i32, i32
  }
  func.func @transform_3(%arg0: i32) -> (i32, i32) {
    %c0_i32 = arith.constant 0 : i32
    %c0_i32_0 = arith.constant 0 : i32
    %c0_i32_1 = arith.constant 0 : i32
    return %c0_i32, %c0_i32_0 : i32, i32
  }
  func.func @transform_4(%arg0: i32) -> (i32, i32) {
    %c0_i32 = arith.constant 0 : i32
    %c0_i32_0 = arith.constant 0 : i32
    %c0_i32_1 = arith.constant 0 : i32
    return %c0_i32, %c0_i32_0 : i32, i32
  }
  func.func @transform_5(%arg0: i32) -> (i32, i32) {
    %c0_i32 = arith.constant 0 : i32
    %c0_i32_0 = arith.constant 0 : i32
    return %arg0, %c0_i32 : i32, i32
  }
}

</mosaic_0001>

<llo_original>
// kernel: tpu_custom_call.1
$region0: #{tpu_custom_call.1}
  #allocation0 [shape = 'u32[]', space=smem, size = 0x4, offset = 0x4, fixed_abs, tag = 'smem constant byte address 0x4 - core index']
  #allocation1 [shape = 'u32[72,128]{1,0:T(1,128)}', space=vmem, size = 0x9000, scoped, tag = 'internal scratch']
  %s0 = inlined_call_operand.vmem [shape: f32[8,32], index: 0, kind: input, shape index: {}]
  %s1 = inlined_call_operand.vmem [shape: bf16[32,64], index: 1, kind: input, shape index: {}]
  %s2 = inlined_call_operand.vmem [shape: f32[1,64], index: 2, kind: input, shape index: {}]
  %s3 = inlined_call_operand.vmem [shape: bf16[64,16], index: 3, kind: input, shape index: {}]
  %s4 = inlined_call_operand.vmem [shape: f32[1,16], index: 4, kind: input, shape index: {}]
  %s5 = inlined_call_operand.hbm [shape: f32[8,16], index: 5, kind: output, shape index: {}]
  %s6 = sld [smem:[#allocation0]]
  $region30: #{tpu_custom_call.1} parent=0
    _
  %s8 = ssub.s32 1, %s6
  %s9 = scalar_select 0, %s8, %s6
  $region1: #{tpu_custom_call.1} parent=0
    #allocation2 [shape = 'u8[4096]{0}', space=vmem, size = 0x1000, scoped, tag = 'output window, operand 0, single buffered']
    #allocation3 [shape = 's32[1]{0}', space=sflag, size = 0x4, scoped, tag = 'scoped memory for tpu_custom_call.1']
    %10 = vsyncpa [#allocation3], 0
    // Predicated region
    $region2: #{tpu_custom_call.1} parent=1 // pred_check
      _
    $region3: #{tpu_custom_call.1} parent=1 // pred_check_branch
      %12 = sbr.rel (0) target = $region5
    $region4: #{tpu_custom_call.1} parent=1 // pred_region
      _
    $region5: #{tpu_custom_call.1} parent=1 // pred_fallthru
      _
    // Predicated region
    $region6: #{tpu_custom_call.1} parent=1 // pred_check
      _
    $region7: #{tpu_custom_call.1} parent=1 // pred_check_branch
      %14 = sbr.rel (0) target = $region9
    $region8: #{tpu_custom_call.1} parent=1 // pred_region
      _
    $region9: #{tpu_custom_call.1} parent=1 // pred_fallthru
      _
    // Predicated region
    $region10: #{tpu_custom_call.1} parent=1 // pred_check
      _
    $region11: #{tpu_custom_call.1} parent=1 // pred_check_branch
      %16 = sbr.rel (0) target = $region13
    $region12: #{tpu_custom_call.1} parent=1 // pred_region
      _
    $region13: #{tpu_custom_call.1} parent=1 // pred_fallthru
      _
    // Predicated region
    $region14: #{tpu_custom_call.1} parent=1 // pred_check
      _
    $region15: #{tpu_custom_call.1} parent=1 // pred_check_branch
      %18 = sbr.rel (0) target = $region17
    $region16: #{tpu_custom_call.1} parent=1 // pred_region
      _
    $region17: #{tpu_custom_call.1} parent=1 // pred_fallthru
      _
    // Predicated region
    $region18: #{tpu_custom_call.1} parent=1 // pred_check
      _
    $region19: #{tpu_custom_call.1} parent=1 // pred_check_branch
      %20 = sbr.rel (0) target = $region21
    $region20: #{tpu_custom_call.1} parent=1 // pred_region
      _
    $region21: #{tpu_custom_call.1} parent=1 // pred_fallthru
      _
    %v22 = vld [vmem:[%s0] sm:$0xff]
    %v23 = vpack.c.bf16 %v22, %v22
    %v24 = vld [vmem:[%s1] sm:$0xf]
    %v25 = vld [vmem:[%s1 + $0x4] sm:$0xf]
    %v26 = vld [vmem:[%s1 + $0x8] sm:$0xf]
    %v27 = vld [vmem:[%s1 + $0xc] sm:$0xf]
    %v28 = vld [vmem:[%s2] sm:$0x1]
    %v30 = vperm.slane %v28, 0
    %v36 = vunpack.c.l.b16 %v24
    %v37 = vunpack.c.l.b16 %v25
    %v38 = vunpack.c.l.b16 %v26
    %v39 = vunpack.c.l.b16 %v27
    %v40 = vpack.c.b16 %v37, %v36
    %v41 = vpack.c.b16 %v39, %v38
    %vm44 = vcmask 261120
    %v46 = vsel %vm44, %v23, 0
    %48 = vmatpush.bf16.msra.mxu0 0
    %49 = vmatpush.bf16.msra.mxu0 0
    %50 = vmatpush.bf16.msra.mxu0 0
    %51 = vmatpush.bf16.msra.mxu0 0
    %52 = vmatpush.bf16.msra.mxu0 0
    %53 = vmatpush.bf16.msra.mxu0 0
    %54 = vmatpush.bf16.msra.mxu0 %v41
    %55 = vmatpush.bf16.msra.mxu0 %v40
    %56 = vmatmul.bf16.gmra.mxu0 %v46
    %v57 = vpop.f32.mrf.mxu0
    %v58 = vadd.f32 %v30, %v57
    %v59 = vpop.f32.mrf.mxu0
    %60 = vdwg.mxu0
    %v61 = vsub.f32 0.0, %v58
    %v62 = vmul.f32 %v61, 1.442695
    %v63 = vpow.pop %v62
    %v64 = vadd.f32 %v63, 1.0
    %v65 = vrcp.pop %v64
    %v66 = vpack.c.bf16 %v65, %v65
    %v67 = vld [vmem:[%s3] sm:$0xf]
    %v68 = vld [vmem:[%s3 + $0x4] sm:$0xf]
    %v69 = vld [vmem:[%s3 + $0x8] sm:$0xf]
    %v70 = vld [vmem:[%s3 + $0xc] sm:$0xf]
    %v71 = vld [vmem:[%s3 + $0x10] sm:$0xf]
    %v72 = vld [vmem:[%s3 + $0x14] sm:$0xf]
    %v73 = vld [vmem:[%s3 + $0x18] sm:$0xf]
    %v74 = vld [vmem:[%s3 + $0x1c] sm:$0xf]
    %v75 = vld [vmem:[%s4] sm:$0x1]
    %v77 = vperm.slane %v75, 0
    %v87 = vunpack.c.l.b16 %v67
    %v88 = vunpack.c.l.b16 %v68
    %v89 = vunpack.c.l.b16 %v69
    %v90 = vunpack.c.l.b16 %v70
    %v91 = vunpack.c.l.b16 %v71
    %v92 = vunpack.c.l.b16 %v72
    %v93 = vunpack.c.l.b16 %v73
    %v94 = vunpack.c.l.b16 %v74
    %v95 = vpack.c.b16 %v88, %v87
    %v96 = vpack.c.b16 %v90, %v89
    %v97 = vpack.c.b16 %v92, %v91
    %v98 = vpack.c.b16 %v94, %v93
    %vm103 = vcmask 523264
    %v105 = vsel %vm103, %v66, 0
    %107 = vmatpush.bf16.msra.mxu0 0
    %108 = vmatpush.bf16.msra.mxu0 0
    %109 = vmatpush.bf16.msra.mxu0 0
    %110 = vmatpush.bf16.msra.mxu0 0
    %111 = vmatpush.bf16.msra.mxu0 %v98
    %112 = vmatpush.bf16.msra.mxu0 %v97
    %113 = vmatpush.bf16.msra.mxu0 %v96
    %114 = vmatpush.bf16.msra.mxu0 %v95
    %115 = vmatmul.bf16.gmra.mxu0 %v105
    %v116 = vpop.f32.mrf.mxu0
    %v117 = vadd.f32 %v77, %v116
    %v118 = vpop.f32.mrf.mxu0
    %119 = vdwg.mxu0
    %v120 = vsub.f32 0.0, %v117
    %v121 = vmul.f32 %v120, 1.442695
    %v122 = vpow.pop %v121
    %v123 = vadd.f32 %v122, 1.0
    %v124 = vrcp.pop %v123
    %vm125 = vcmask 130048
    %126 = vst.msk [vmem:[#allocation2] sm:$0xff] %vm125, %v124
    // Predicated region
    $region22: #{tpu_custom_call.1} parent=1 // pred_check
      _
    $region23: #{tpu_custom_call.1} parent=1 // pred_check_branch
      %128 = sbr.rel (0) target = $region25
    $region24: #{tpu_custom_call.1} parent=1 // pred_region
      %130 = vsyncadd [#allocation3], 0
      %s132 = sshll.u32 [#allocation2], 4
      %s133 = int_to_ptr.vmem [resolvable:$true] %s132
      %s134 = sshll.u32 %s5, 4
      %s135 = int_to_ptr.hbm [resolvable:$true] %s134
      %137 = dma.vmem_to_hbm [thread:$0]  %s133, 128, %s135, [#allocation3]
    $region25: #{tpu_custom_call.1} parent=1 // pred_fallthru
      _
    // Predicated region
    $region26: #{tpu_custom_call.1} parent=1 // pred_check
      _
    $region27: #{tpu_custom_call.1} parent=1 // pred_check_branch
      %139 = sbr.rel (0) target = $region29
    $region28: #{tpu_custom_call.1} parent=1 // pred_region
      %141 = dma.done [#allocation3], 128
    $region29: #{tpu_custom_call.1} parent=1 // pred_fallthru
      _
    %142 = vsyncpa [#allocation3], 1

</llo_original>
